<compile_context>
chip_gen: v6e
topology: v6e:2x2x1
jax: 0.10.0
libtpu: 0.0.40
codegen_flags: <defaults>
</compile_context>

<pallas_src>
import jax
import jax.numpy as jnp
from jax.experimental import pallas as pl
from jax.experimental.pallas import tpu as pltpu

# ---- model dims (small, consistent with the module) ----
B = 2                 # batch
S = 8                 # sequence length
HIDDEN = 32           # config.hidden_size
INTERMEDIATE = 128    # config.intermediate_size (4 * hidden)
LN_EPS = 1e-12


def bert_output_kernel(h_ref, res_ref, w_ref, b_ref, gamma_ref, beta_ref, out_ref):
    """Single invocation: whole (B*S, I) problem in VMEM.

    h_ref:    (B*S, INTERMEDIATE)  intermediate activations ("hidden_states")
    res_ref:  (B*S, HIDDEN)        residual input ("input_tensor")
    w_ref:    (INTERMEDIATE, HIDDEN)   dense weight, pre-transposed for x @ W
    b_ref:    (1, HIDDEN)
    gamma_ref/beta_ref: (1, HIDDEN)    LayerNorm affine params
    out_ref:  (B*S, HIDDEN)
    """
    h = h_ref[...]                          # (16, 128)
    res = res_ref[...]                      # (16, 32)

    # --- dense (QuantizeLinear with 32-bit weights/inputs == plain Linear) ---
    y = jnp.dot(h, w_ref[...], preferred_element_type=jnp.float32) + b_ref[...]

    # TODO(synk): dropout omitted (eval mode -> identity).

    # --- residual add + LayerNorm (BertLayerNorm, eps=1e-12) ---
    z = y + res
    mu = jnp.mean(z, axis=-1, keepdims=True)
    zc = z - mu
    var = jnp.mean(zc * zc, axis=-1, keepdims=True)
    zn = zc * jax.lax.rsqrt(var + LN_EPS)          # rsqrt -> EUP slot
    out_ref[...] = (zn * gamma_ref[...] + beta_ref[...]).astype(out_ref.dtype)


def bert_output(hidden_states, input_tensor, w, b, gamma, beta):
    """hidden_states: (B, S, I), input_tensor: (B, S, H) -> (B, S, H)."""
    Bb, Ss, I = hidden_states.shape
    Hh = input_tensor.shape[-1]

    # Fold batch*seq into the sublane axis so the matmul has full 128-deep
    # contraction and 16 sublane rows (instead of a per-batch serial grid).
    h2d = hidden_states.reshape(Bb * Ss, I)
    r2d = input_tensor.reshape(Bb * Ss, Hh)

    vmem = pl.BlockSpec(memory_space=pltpu.MemorySpace.VMEM)
    out2d = pl.pallas_call(
        bert_output_kernel,
        out_shape=jax.ShapeDtypeStruct((Bb * Ss, Hh), jnp.float32),
        in_specs=[vmem] * 6,
        out_specs=vmem,
    )(h2d, r2d, w, b, gamma, beta)
    return out2d.reshape(Bb, Ss, Hh)


def reference(hidden_states, input_tensor, w, b, gamma, beta):
    """Pure-JAX reference mirroring the PyTorch forward (32-bit config, eval)."""
    y = hidden_states @ w + b
    z = y + input_tensor
    mu = jnp.mean(z, axis=-1, keepdims=True)
    var = jnp.mean((z - mu) ** 2, axis=-1, keepdims=True)
    return (z - mu) / jnp.sqrt(var + LN_EPS) * gamma + beta


if __name__ == "__main__":
    key = jax.random.PRNGKey(0)
    k1, k2, k3, k4, k5, k6 = jax.random.split(key, 6)

    hidden_states = jax.random.normal(k1, (B, S, INTERMEDIATE), jnp.float32)
    input_tensor = jax.random.normal(k2, (B, S, HIDDEN), jnp.float32)

    w = 0.05 * jax.random.normal(k3, (INTERMEDIATE, HIDDEN), jnp.float32)
    b = 0.05 * jax.random.normal(k4, (1, HIDDEN), jnp.float32)
    gamma = 1.0 + 0.1 * jax.random.normal(k5, (1, HIDDEN), jnp.float32)
    beta = 0.1 * jax.random.normal(k6, (1, HIDDEN), jnp.float32)

    out = bert_output(hidden_states, input_tensor, w, b, gamma, beta)
    out = jax.block_until_ready(out)

    ref = reference(hidden_states, input_tensor, w, b, gamma, beta)
    assert out.shape == (B, S, HIDDEN), f"bad output shape {out.shape}"
    assert jnp.allclose(out, ref, atol=1e-4, rtol=1e-4), "BertOutput mismatch"

    print("KERNEL_OK")
</pallas_src>

<mosaic_0001>
module attributes {stable_mosaic.version = 11 : i64} {
  func.func @bert_output_kernel(%arg0: memref<16x128xf32, #tpu.memory_space<vmem>>, %arg1: memref<16x32xf32, #tpu.memory_space<vmem>>, %arg2: memref<128x32xf32, #tpu.memory_space<vmem>>, %arg3: memref<1x32xf32, #tpu.memory_space<vmem>>, %arg4: memref<1x32xf32, #tpu.memory_space<vmem>>, %arg5: memref<1x32xf32, #tpu.memory_space<vmem>>, %arg6: memref<16x32xf32, #tpu.memory_space<vmem>>) attributes {dimension_semantics = [], scalar_prefetch = 0 : i64, scratch_operands = 0 : i64, tpu.core_type = #tpu.core_type<tc>} {
    %c0 = arith.constant 0 : index
    %c0_0 = arith.constant 0 : index
    %0 = vector.load %arg0[%c0, %c0_0] : memref<16x128xf32, #tpu.memory_space<vmem>>, vector<16x128xf32>
    %c0_1 = arith.constant 0 : index
    %c0_2 = arith.constant 0 : index
    %1 = vector.load %arg1[%c0_1, %c0_2] : memref<16x32xf32, #tpu.memory_space<vmem>>, vector<16x32xf32>
    %c0_3 = arith.constant 0 : index
    %c0_4 = arith.constant 0 : index
    %2 = vector.load %arg2[%c0_3, %c0_4] : memref<128x32xf32, #tpu.memory_space<vmem>>, vector<128x32xf32>
    %cst = arith.constant dense<0.000000e+00> : vector<16x32xf32>
    %3 = tpu.matmul %0, %2, %cst {dimension_numbers = #tpu.dot_dimension_numbers<[1], [0], [0], [1], [0, 0, 1, 1], [], []>} : vector<16x128xf32>, vector<128x32xf32>, vector<16x32xf32> -> vector<16x32xf32>
    %c0_5 = arith.constant 0 : index
    %c0_6 = arith.constant 0 : index
    %4 = vector.load %arg3[%c0_5, %c0_6] : memref<1x32xf32, #tpu.memory_space<vmem>>, vector<1x32xf32>
    %5 = vector.broadcast %4 : vector<1x32xf32> to vector<16x32xf32>
    %6 = arith.addf %3, %5 : vector<16x32xf32>
    %7 = arith.addf %6, %1 : vector<16x32xf32>
    %cst_7 = arith.constant dense<0.000000e+00> : vector<16xf32>
    %8 = vector.multi_reduction <add>, %7, %cst_7 [1] : vector<16x32xf32> to vector<16xf32>
    %9 = vector.shape_cast %8 : vector<16xf32> to vector<16x1xf32>
    %cst_8 = arith.constant 3.200000e+01 : f32
    %10 = vector.broadcast %cst_8 : f32 to vector<16x1xf32>
    %11 = arith.divf %9, %10 : vector<16x1xf32>
    %12 = vector.broadcast %11 : vector<16x1xf32> to vector<16x32xf32>
    %13 = arith.subf %7, %12 : vector<16x32xf32>
    %14 = arith.mulf %13, %13 : vector<16x32xf32>
    %cst_9 = arith.constant dense<0.000000e+00> : vector<16xf32>
    %15 = vector.multi_reduction <add>, %14, %cst_9 [1] : vector<16x32xf32> to vector<16xf32>
    %16 = vector.shape_cast %15 : vector<16xf32> to vector<16x1xf32>
    %cst_10 = arith.constant 3.200000e+01 : f32
    %17 = vector.broadcast %cst_10 : f32 to vector<16x1xf32>
    %18 = arith.divf %16, %17 : vector<16x1xf32>
    %cst_11 = arith.constant 9.99999996E-13 : f32
    %19 = vector.broadcast %cst_11 : f32 to vector<16x1xf32>
    %20 = arith.addf %18, %19 : vector<16x1xf32>
    %21 = math.rsqrt %20 : vector<16x1xf32>
    %22 = vector.broadcast %21 : vector<16x1xf32> to vector<16x32xf32>
    %23 = arith.mulf %13, %22 : vector<16x32xf32>
    %c0_12 = arith.constant 0 : index
    %c0_13 = arith.constant 0 : index
    %24 = vector.load %arg4[%c0_12, %c0_13] : memref<1x32xf32, #tpu.memory_space<vmem>>, vector<1x32xf32>
    %25 = vector.broadcast %24 : vector<1x32xf32> to vector<16x32xf32>
    %26 = arith.mulf %23, %25 : vector<16x32xf32>
    %c0_14 = arith.constant 0 : index
    %c0_15 = arith.constant 0 : index
    %27 = vector.load %arg5[%c0_14, %c0_15] : memref<1x32xf32, #tpu.memory_space<vmem>>, vector<1x32xf32>
    %28 = vector.broadcast %27 : vector<1x32xf32> to vector<16x32xf32>
    %29 = arith.addf %26, %28 : vector<16x32xf32>
    %c0_16 = arith.constant 0 : index
    %c0_17 = arith.constant 0 : index
    %30 = vector.load %arg6[%c0_16, %c0_17] : memref<16x32xf32, #tpu.memory_space<vmem>>, vector<16x32xf32>
    tpu.vector_store %arg6[%c0_16, %c0_17], %29 {strides = array<i32>} : memref<16x32xf32, #tpu.memory_space<vmem>>, vector<16x32xf32>,
    return
  }
}

</mosaic_0001>

<llo_original>
// kernel: tpu_custom_call.1
$region0: #{tpu_custom_call.1}
  #allocation0 [shape = 'u32[]', space=smem, size = 0x4, offset = 0x4, fixed_abs, tag = 'smem constant byte address 0x4 - core index']
  #allocation1 [shape = 'u32[144,128]{1,0:T(1,128)}', space=vmem, size = 0x12000, scoped, tag = 'internal scratch']
  %s0 = inlined_call_operand.vmem [shape: f32[16,128], index: 0, kind: input, shape index: {}]
  %s1 = inlined_call_operand.vmem [shape: f32[16,32], index: 1, kind: input, shape index: {}]
  %s2 = inlined_call_operand.vmem [shape: f32[128,32], index: 2, kind: input, shape index: {}]
  %s3 = inlined_call_operand.vmem [shape: f32[1,32], index: 3, kind: input, shape index: {}]
  %s4 = inlined_call_operand.vmem [shape: f32[1,32], index: 4, kind: input, shape index: {}]
  %s5 = inlined_call_operand.vmem [shape: f32[1,32], index: 5, kind: input, shape index: {}]
  %s6 = inlined_call_operand.hbm [shape: f32[16,32], index: 6, kind: output, shape index: {}]
  %s7 = sld [smem:[#allocation0]]
  $region34: #{tpu_custom_call.1} parent=0
    _
  %s9 = ssub.s32 1, %s7
  %s10 = scalar_select 0, %s9, %s7
  $region1: #{tpu_custom_call.1} parent=0
    #allocation2 [shape = 'u8[8192]{0}', space=vmem, size = 0x2000, scoped, tag = 'output window, operand 0, single buffered']
    #allocation3 [shape = 's32[1]{0}', space=sflag, size = 0x4, scoped, tag = 'scoped memory for tpu_custom_call.1']
    %11 = vsyncpa [#allocation3], 0
    // Predicated region
    $region2: #{tpu_custom_call.1} parent=1 // pred_check
      _
    $region3: #{tpu_custom_call.1} parent=1 // pred_check_branch
      %13 = sbr.rel (0) target = $region5
    $region4: #{tpu_custom_call.1} parent=1 // pred_region
      _
    $region5: #{tpu_custom_call.1} parent=1 // pred_fallthru
      _
    // Predicated region
    $region6: #{tpu_custom_call.1} parent=1 // pred_check
      _
    $region7: #{tpu_custom_call.1} parent=1 // pred_check_branch
      %15 = sbr.rel (0) target = $region9
    $region8: #{tpu_custom_call.1} parent=1 // pred_region
      _
    $region9: #{tpu_custom_call.1} parent=1 // pred_fallthru
      _
    // Predicated region
    $region10: #{tpu_custom_call.1} parent=1 // pred_check
      _
    $region11: #{tpu_custom_call.1} parent=1 // pred_check_branch
      %17 = sbr.rel (0) target = $region13
    $region12: #{tpu_custom_call.1} parent=1 // pred_region
      _
    $region13: #{tpu_custom_call.1} parent=1 // pred_fallthru
      _
    // Predicated region
    $region14: #{tpu_custom_call.1} parent=1 // pred_check
      _
    $region15: #{tpu_custom_call.1} parent=1 // pred_check_branch
      %19 = sbr.rel (0) target = $region17
    $region16: #{tpu_custom_call.1} parent=1 // pred_region
      _
    $region17: #{tpu_custom_call.1} parent=1 // pred_fallthru
      _
    // Predicated region
    $region18: #{tpu_custom_call.1} parent=1 // pred_check
      _
    $region19: #{tpu_custom_call.1} parent=1 // pred_check_branch
      %21 = sbr.rel (0) target = $region21
    $region20: #{tpu_custom_call.1} parent=1 // pred_region
      _
    $region21: #{tpu_custom_call.1} parent=1 // pred_fallthru
      _
    // Predicated region
    $region22: #{tpu_custom_call.1} parent=1 // pred_check
      _
    $region23: #{tpu_custom_call.1} parent=1 // pred_check_branch
      %23 = sbr.rel (0) target = $region25
    $region24: #{tpu_custom_call.1} parent=1 // pred_region
      _
    $region25: #{tpu_custom_call.1} parent=1 // pred_fallthru
      _
    %v24 = vld [vmem:[%s0] sm:$0xff]
    %v25 = vld [vmem:[%s0 + $0x8] sm:$0xff]
    %v26 = vld [vmem:[%s1] sm:$0xff]
    %v27 = vld [vmem:[%s1 + $0x8] sm:$0xff]
    %v28 = vld [vmem:[%s2] sm:$0xff]
    %v29 = vld [vmem:[%s2 + $0x8] sm:$0xff]
    %v30 = vld [vmem:[%s2 + $0x10] sm:$0xff]
    %v31 = vld [vmem:[%s2 + $0x18] sm:$0xff]
    %v32 = vld [vmem:[%s2 + $0x20] sm:$0xff]
    %v33 = vld [vmem:[%s2 + $0x28] sm:$0xff]
    %v34 = vld [vmem:[%s2 + $0x30] sm:$0xff]
    %v35 = vld [vmem:[%s2 + $0x38] sm:$0xff]
    %v36 = vld [vmem:[%s2 + $0x40] sm:$0xff]
    %v37 = vld [vmem:[%s2 + $0x48] sm:$0xff]
    %v38 = vld [vmem:[%s2 + $0x50] sm:$0xff]
    %v39 = vld [vmem:[%s2 + $0x58] sm:$0xff]
    %v40 = vld [vmem:[%s2 + $0x60] sm:$0xff]
    %v41 = vld [vmem:[%s2 + $0x68] sm:$0xff]
    %v42 = vld [vmem:[%s2 + $0x70] sm:$0xff]
    %v43 = vld [vmem:[%s2 + $0x78] sm:$0xff]
    %v44 = vld [vmem:[%s3] sm:$0x1]
    %v46 = vlaneseq
    %v47 = vshrl.u32 %v46, 7
    %v48 = vsub.s32 0, %v47
    %v49 = vrot.slane %v44, %v48
    %51 = vmatprep.subr.mxu0 0.0
    %52 = vmatpush1.msra.mxu0 %v43
    %53 = vmatprep.subr.mxu0 0.0
    %54 = vmatpush1.msra.mxu0 %v42
    %55 = vmatprep.subr.mxu0 0.0
    %56 = vmatpush1.msra.mxu0 %v41
    %57 = vmatprep.subr.mxu0 0.0
    %58 = vmatpush1.msra.mxu0 %v40
    %59 = vmatprep.subr.mxu0 0.0
    %60 = vmatpush1.msra.mxu0 %v39
    %61 = vmatprep.subr.mxu0 0.0
    %62 = vmatpush1.msra.mxu0 %v38
    %63 = vmatprep.subr.mxu0 0.0
    %64 = vmatpush1.msra.mxu0 %v37
    %65 = vmatprep.subr.mxu0 0.0
    %66 = vmatpush1.msra.mxu0 %v36
    %67 = vmatprep.subr.mxu0 0.0
    %68 = vmatpush1.msra.mxu0 %v35
    %69 = vmatprep.subr.mxu0 0.0
    %70 = vmatpush1.msra.mxu0 %v34
    %71 = vmatprep.subr.mxu0 0.0
    %72 = vmatpush1.msra.mxu0 %v33
    %73 = vmatprep.subr.mxu0 0.0
    %74 = vmatpush1.msra.mxu0 %v32
    %75 = vmatprep.subr.mxu0 0.0
    %76 = vmatpush1.msra.mxu0 %v31
    %77 = vmatprep.subr.mxu0 0.0
    %78 = vmatpush1.msra.mxu0 %v30
    %79 = vmatprep.subr.mxu0 0.0
    %80 = vmatpush1.msra.mxu0 %v29
    %81 = vmatprep.subr.mxu0 0.0
    %82 = vmatpush1.msra.mxu0 %v28
    %83 = vmatprep.subr.mxu0 0.0
    %84 = vmatpush2.msra.mxu0 0.0
    %85 = vmatprep.subr.mxu0 0.0
    %86 = vmatpush2.msra.mxu0 0.0
    %87 = vmatprep.subr.mxu0 0.0
    %88 = vmatpush2.msra.mxu0 0.0
    %89 = vmatprep.subr.mxu0 0.0
    %90 = vmatpush2.msra.mxu0 0.0
    %91 = vmatprep.subr.mxu0 0.0
    %92 = vmatpush2.msra.mxu0 0.0
    %93 = vmatprep.subr.mxu0 0.0
    %94 = vmatpush2.msra.mxu0 0.0
    %95 = vmatprep.subr.mxu0 0.0
    %96 = vmatpush2.msra.mxu0 0.0
    %97 = vmatprep.subr.mxu0 0.0
    %98 = vmatpush2.msra.mxu0 0.0
    %99 = vmatprep.subr.mxu0 0.0
    %100 = vmatpush2.msra.mxu0 0.0
    %101 = vmatprep.subr.mxu0 0.0
    %102 = vmatpush2.msra.mxu0 0.0
    %103 = vmatprep.subr.mxu0 0.0
    %104 = vmatpush2.msra.mxu0 0.0
    %105 = vmatprep.subr.mxu0 0.0
    %106 = vmatpush2.msra.mxu0 0.0
    %107 = vmatprep.subr.mxu0 0.0
    %108 = vmatpush2.msra.mxu0 0.0
    %109 = vmatprep.subr.mxu0 0.0
    %110 = vmatpush2.msra.mxu0 0.0
    %111 = vmatprep.subr.mxu0 0.0
    %112 = vmatpush2.msra.mxu0 0.0
    %113 = vmatprep.subr.mxu0 0.0
    %114 = vmatpush2.msra.mxu0 0.0
    %115 = vmatprep.mubr.f32.mxu0 0.0
    %116 = vmatmul.mubr.f32.gmra.mxu0 %v24
    %v117 = vpop.f32.mrf.mxu0
    %v118 = vadd.f32 %v49, %v117
    %v119 = vpop.f32.mrf.mxu0
    %120 = vmatprep.mubr.f32.mxu0 0.0
    %121 = vmatmul.mubr.f32.gmra.mxu0 %v25
    %v122 = vpop.f32.mrf.mxu0
    %v123 = vadd.f32 %v49, %v122
    %v124 = vpop.f32.mrf.mxu0
    %125 = vdwg.mxu0
    %v126 = vadd.f32 %v118, %v26
    %v127 = vadd.f32 %v123, %v27
    %vm128 = vcmask 261120
    %v129 = vsel %vm128, %v126, 0.0
    %130 = vadd.xlane.f32.xlu0 %v129
    %v131 = vpop.xlane.xlu0 %130
    %v132 = vsel %vm128, %v127, 0.0
    %133 = vadd.xlane.f32.xlu0 %v132
    %v134 = vpop.xlane.xlu0 %133
    %v135 = vrcp.pop 32.0
    %v136 = vmul.f32 %v131, %v135
    %v137 = vmul.f32 %v134, %v135
    %v138 = vsub.f32 %v126, %v136
    %v139 = vsub.f32 %v127, %v137
    %v140 = vmul.f32 %v138, %v138
    %v141 = vmul.f32 %v139, %v139
    %v142 = vsel %vm128, %v140, 0.0
    %143 = vadd.xlane.f32.xlu0 %v142
    %v144 = vpop.xlane.xlu0 %143
    %v145 = vsel %vm128, %v141, 0.0
    %146 = vadd.xlane.f32.xlu0 %v145
    %v147 = vpop.xlane.xlu0 %146
    %v148 = vmul.f32 %v144, %v135
    %v149 = vmul.f32 %v147, %v135
    %v150 = vadd.f32 %v148, 1e-12
    %v151 = vadd.f32 %v149, 1e-12
    %v152 = vrsqrt.pop %v150
    %v153 = vrsqrt.pop %v151
    %v154 = vmul.f32 %v138, %v152
    %v155 = vmul.f32 %v139, %v153
    %v156 = vld [vmem:[%s4] sm:$0x1]
    %v158 = vlaneseq
    %v159 = vshrl.u32 %v158, 7
    %v160 = vsub.s32 0, %v159
    %v161 = vrot.slane %v156, %v160
    %v163 = vmul.f32 %v154, %v161
    %v164 = vmul.f32 %v155, %v161
    %v165 = vld [vmem:[%s5] sm:$0x1]
    %v167 = vlaneseq
    %v168 = vshrl.u32 %v167, 7
    %v169 = vsub.s32 0, %v168
    %v170 = vrot.slane %v165, %v169
    %v172 = vadd.f32 %v163, %v170
    %v173 = vadd.f32 %v164, %v170
    %174 = vst.msk [vmem:[#allocation2] sm:$0xff] %vm128, %v172
    %175 = vst.msk [vmem:[#allocation2 + $0x8] sm:$0xff] %vm128, %v173
    // Predicated region
    $region26: #{tpu_custom_call.1} parent=1 // pred_check
      _
    $region27: #{tpu_custom_call.1} parent=1 // pred_check_branch
      %177 = sbr.rel (0) target = $region29
    $region28: #{tpu_custom_call.1} parent=1 // pred_region
      %s179 = ssub.s32 256, 256
      %180 = vsyncadd [#allocation3], %s179
      %s181 = sshll.u32 [#allocation2], 4
      %s182 = int_to_ptr.vmem [resolvable:$true] %s181
      %187 = dma.vmem_to_hbm [thread:$0]  %s182, 256, %s6, [#allocation3], 128, 128, 8
    $region29: #{tpu_custom_call.1} parent=1 // pred_fallthru
      _
    // Predicated region
    $region30: #{tpu_custom_call.1} parent=1 // pred_check
      _
    $region31: #{tpu_custom_call.1} parent=1 // pred_check_branch
      %189 = sbr.rel (0) target = $region33
    $region32: #{tpu_custom_call.1} parent=1 // pred_region
      %190 = dma.done [#allocation3], 256
    $region33: #{tpu_custom_call.1} parent=1 // pred_fallthru
      _
    %191 = vsyncpa [#allocation3], 1

</llo_original>
